<compile_context>
chip_gen: v6e
topology: v6e:2x2x1
jax: 0.10.0
libtpu: 0.0.40
codegen_flags: <defaults>
</compile_context>

<pallas_src>
import functools
import random

import numpy as np
import jax
import jax.numpy as jnp
from jax.experimental import pallas as pl
from jax.experimental.pallas import tpu as pltpu


def _round_up(x, m):
    return (x + m - 1) // m * m


def _mean_agg_attention_kernel(x_ref, invn_ref, drop_ref,
                               w1bd_ref, b1t_ref, w2seg_ref,
                               rep_ref, fold_ref, o_ref):
    # x_ref     : [TB, S*D] bf16  lane-dense neighbor sequences (row = S neighbors concat)
    # invn_ref  : [TB, 1]   f32   1 / num_neigh
    # drop_ref  : [TB, D]   bf16  dropout scale mask, values in {0, 2}
    # w1bd_ref  : [S*D,S*A] bf16  kron(I_S, W1)        (block-diag attention weight)
    # b1t_ref   : [1, S*A]  f32   b1 tiled S times
    # w2seg_ref : [S*A, S]  f32   kron(I_S, w2^T)      (per-neighbor context proj)
    # rep_ref   : [S, S*D]  bf16  kron(I_S, ones(1,D)) (repeat weight over D lanes)
    # fold_ref  : [S*D, D]  bf16  kron(ones(S,1), I_D) (sum over the S slots)
    x = x_ref[...]                                           # stays bf16 (MXU/VPU)

    # SeqAttentionLayer: linear + tanh for all S neighbor slots in one
    # lane-dense MXU matmul, f32 accumulation.
    att = jnp.tanh(
        jnp.dot(x, w1bd_ref[...], preferred_element_type=jnp.float32)
        + b1t_ref[...])                                      # [TB, S*A] f32

    # Context-vector logits per neighbor slot (block-diag projection keeps it
    # on the MXU; no in-kernel reshape).  Softmax over the neighbor axis is
    # intentionally unmasked over zero-padded slots, matching the reference.
    logits = jnp.dot(att, w2seg_ref[...],
                     preferred_element_type=jnp.float32)     # [TB, S] f32
    m = jnp.max(logits, axis=-1, keepdims=True)
    p = jnp.exp(logits - m)
    w = p / jnp.sum(p, axis=-1, keepdims=True)               # softmax, dim=1
    # Fold 1/num_neigh into the weights (relu commutes with a positive scale).
    w = w * invn_ref[...]                                    # [TB, S] f32

    # Weighted sum over neighbors, lane-dense end to end:
    #   exact 0/1 matmul repeats each weight over its D lanes, bf16 VPU multiply
    #   with x, then a 0/1 fold matmul sums the S slots with f32 accumulation.
    w_rep = jnp.dot(w.astype(jnp.bfloat16), rep_ref[...],
                    preferred_element_type=jnp.float32).astype(jnp.bfloat16)
    wsum = jnp.dot(w_rep * x, fold_ref[...],
                   preferred_element_type=jnp.float32)       # [TB, D] f32

    # relu, then F.dropout(p=0.5, training=True) via the precomputed {0,2} mask.
    o_ref[...] = (jnp.maximum(wsum, 0.0) * drop_ref[...]).astype(o_ref.dtype)


@functools.partial(jax.jit, static_argnames=("tb", "out_dtype"))
def mean_aggregator_attention(seq_neigh, inv_num_neigh, drop_scale, w1, b1, w2,
                              *, tb=2048, out_dtype=jnp.float32):
    """seq_neigh [B,S,D] (ideally already bf16), inv_num_neigh [B,1] f32,
    drop_scale [B,D] {0,2} (ideally bf16), w1 [D,A], b1 [1,A], w2 [1,A]."""
    B, S, D = seq_neigh.shape
    A = w1.shape[1]
    SD, SA = S * D, S * A

    # Lane-dense flat view; callers should supply bf16 to avoid an extra HBM
    # cast pass (the demo builds bf16 at the source, so these casts are no-ops).
    x = seq_neigh.reshape(B, SD)
    if x.dtype != jnp.bfloat16:
        x = x.astype(jnp.bfloat16)   # TODO(synk): build bf16 upstream to skip this pass
    if drop_scale.dtype != jnp.bfloat16:
        drop_scale = drop_scale.astype(jnp.bfloat16)
    inv_num_neigh = inv_num_neigh.astype(jnp.float32).reshape(B, 1)

    # Tiny constant operands (kron-built, resident in VMEM across grid steps).
    eye_s = jnp.eye(S, dtype=jnp.float32)
    w1_bd = jnp.kron(eye_s, w1.astype(jnp.float32)).astype(jnp.bfloat16)      # [SD, SA]
    b1_t = jnp.tile(b1.astype(jnp.float32).reshape(1, A), (1, S))             # [1, SA]
    w2_seg = jnp.kron(eye_s, w2.astype(jnp.float32).reshape(1, A).T)          # [SA, S]
    rep = jnp.kron(eye_s, jnp.ones((1, D), jnp.float32)).astype(jnp.bfloat16)  # [S, SD]
    fold = jnp.kron(jnp.ones((S, 1), jnp.float32),
                    jnp.eye(D, dtype=jnp.float32)).astype(jnp.bfloat16)       # [SD, D]

    # Batch tiling: big tiles (HBM-bound, amortize per-step overhead), no host
    # padding (Pallas masks the ragged last block; all math is per-row), and
    # >= 2 grid steps when possible so both v7x TensorCores get work.  The 4096
    # cap keeps the per-step footprint well under v7x's 64 MiB VMEM.
    B_r = _round_up(max(B, 1), 8)
    tb = max(8, min(_round_up(min(tb, 4096), 8), B_r))
    if B_r >= 16:
        tb = min(tb, _round_up(pl.cdiv(B_r, 2), 8))
    grid = (pl.cdiv(B, tb),)

    return pl.pallas_call(
        _mean_agg_attention_kernel,
        out_shape=jax.ShapeDtypeStruct((B, D), out_dtype),
        grid=grid,
        in_specs=[
            pl.BlockSpec((tb, SD), lambda i: (i, 0)),   # x (bf16, lane-dense)
            pl.BlockSpec((tb, 1),  lambda i: (i, 0)),   # 1/num_neigh (f32)
            pl.BlockSpec((tb, D),  lambda i: (i, 0)),   # dropout mask (bf16)
            pl.BlockSpec((SD, SA), lambda i: (0, 0)),   # kron(I, W1)  — resident
            pl.BlockSpec((1, SA),  lambda i: (0, 0)),   # b1 tiled
            pl.BlockSpec((SA, S),  lambda i: (0, 0)),   # kron(I, w2^T)
            pl.BlockSpec((S, SD),  lambda i: (0, 0)),   # repeat matrix
            pl.BlockSpec((SD, D),  lambda i: (0, 0)),   # fold matrix
        ],
        out_specs=pl.BlockSpec((tb, D), lambda i: (i, 0)),
        compiler_params=pltpu.CompilerParams(
            dimension_semantics=("parallel",),          # batch axis: v7x megacore
            vmem_limit_bytes=32 * 1024 * 1024,
        ),
    )(x, inv_num_neigh, drop_scale, w1_bd, b1_t, w2_seg, rep, fold)


if __name__ == "__main__":
    # Small shapes consistent with the module.
    B = 16        # batch of nodes
    S = 8         # num_sample
    D = 32        # features_dim
    A = 16        # att_size
    N_NODES = 40  # total nodes in the synthetic graph

    key = jax.random.PRNGKey(0)
    k_feat, k_w1, k_b1, k_w2, k_drop = jax.random.split(key, 5)
    feat_table = jax.random.normal(k_feat, (N_NODES, D), dtype=jnp.float32)
    w1 = jax.random.normal(k_w1, (D, A), dtype=jnp.float32) * 0.1   # seq_attention weight
    b1 = jax.random.normal(k_b1, (1, A), dtype=jnp.float32) * 0.1   # seq_attention bias
    w2 = jax.random.normal(k_w2, (1, A), dtype=jnp.float32) * 0.1   # context vector (no bias)

    # ---- host-side glue replicating MeanAggregator.forward preprocessing ----
    # TODO(synk): neighbor sampling / set-union / zero-padding stays as Python
    # glue, exactly like the torch module.
    random.seed(0)
    nodes = list(range(B))
    to_neighs = [set(random.sample(range(N_NODES), random.randint(3, 14)))
                 for _ in nodes]
    samp_neighs = [set(random.sample(sorted(tn), S)) if len(tn) >= S else tn
                   for tn in to_neighs]
    unique_nodes_list = list(set.union(*samp_neighs))
    unique_nodes = {n: i for i, n in enumerate(unique_nodes_list)}

    num_neigh = np.array([[float(len(sn))] for sn in samp_neighs], dtype=np.float32)
    inv_num_neigh = jnp.asarray(1.0 / num_neigh)

    embed_matrix = np.asarray(feat_table)[np.array(unique_nodes_list)]
    seq_neigh_np = np.zeros((B, S, D), dtype=np.float32)
    for i, samp in enumerate(samp_neighs):
        idx = [unique_nodes[n] for n in samp]
        seq_neigh_np[i, :len(idx)] = embed_matrix[idx]

    # Build the big tensors in bf16 AT THE SOURCE (no extra device cast pass).
    seq_neigh = jnp.asarray(seq_neigh_np, dtype=jnp.bfloat16)
    # F.dropout(p=0.5, training=True): keep-mask pre-scaled by 1/(1-p) = 2.
    # TODO(synk): dropout RNG stream uses jax.random, not torch's RNG.
    drop_scale = jax.random.bernoulli(k_drop, 0.5, (B, D)).astype(jnp.bfloat16) * 2

    out = mean_aggregator_attention(seq_neigh, inv_num_neigh, drop_scale,
                                    w1, b1, w2, tb=2048)
    jax.block_until_ready(out)
    assert out.shape == (B, D) and out.dtype == jnp.float32

    # Pure-JAX reference on the same bf16-rounded inputs (loose tolerance for
    # the in-kernel bf16 weighted-sum path).
    x_f32 = jnp.asarray(seq_neigh, jnp.float32)
    w1_r = jnp.asarray(w1, jnp.bfloat16).astype(jnp.float32)
    att = jnp.tanh(jnp.einsum('bsd,da->bsa', x_f32, w1_r) + b1)
    logits = jnp.einsum('bsa,a->bs', att, w2[0])
    wts = jax.nn.softmax(logits, axis=1)
    wsum = jnp.einsum('bs,bsd->bd', wts, x_f32)
    ref = jnp.maximum(wsum * inv_num_neigh, 0.0) * drop_scale.astype(jnp.float32)
    max_err = float(jnp.max(jnp.abs(out - ref)))
    assert max_err < 5e-2, f"max abs err vs reference: {max_err}"

    print("KERNEL_OK")
</pallas_src>

<mosaic_0001>
module attributes {stable_mosaic.version = 11 : i64} {
  func.func @_mean_agg_attention_kernel(%arg0: i32, %arg1: memref<8x256xbf16, #tpu.memory_space<vmem>>, %arg2: memref<8x1xf32, #tpu.memory_space<vmem>>, %arg3: memref<8x32xbf16, #tpu.memory_space<vmem>>, %arg4: memref<256x128xbf16, #tpu.memory_space<vmem>>, %arg5: memref<1x128xf32, #tpu.memory_space<vmem>>, %arg6: memref<128x8xf32, #tpu.memory_space<vmem>>, %arg7: memref<8x256xbf16, #tpu.memory_space<vmem>>, %arg8: memref<256x32xbf16, #tpu.memory_space<vmem>>, %arg9: memref<8x32xf32, #tpu.memory_space<vmem>>) attributes {dimension_semantics = [#tpu.dimension_semantics<parallel>], iteration_bounds = array<i64: 2>, scalar_prefetch = 0 : i64, scratch_operands = 0 : i64, tpu.core_type = #tpu.core_type<tc>, window_params = [{transform_indices = @transform_0, window_bounds = array<i64: 8, 256>}, {transform_indices = @transform_1, window_bounds = array<i64: 8, 1>}, {transform_indices = @transform_2, window_bounds = array<i64: 8, 32>}, {pipeline_mode = #tpu.pipeline_mode<synchronous>, transform_indices = @transform_3, window_bounds = array<i64: 256, 128>}, {pipeline_mode = #tpu.pipeline_mode<synchronous>, transform_indices = @transform_4, window_bounds = array<i64: 1, 128>}, {pipeline_mode = #tpu.pipeline_mode<synchronous>, transform_indices = @transform_5, window_bounds = array<i64: 128, 8>}, {pipeline_mode = #tpu.pipeline_mode<synchronous>, transform_indices = @transform_6, window_bounds = array<i64: 8, 256>}, {pipeline_mode = #tpu.pipeline_mode<synchronous>, transform_indices = @transform_7, window_bounds = array<i64: 256, 32>}, {transform_indices = @transform_8, window_bounds = array<i64: 8, 32>}]} {
    %c0 = arith.constant 0 : index
    %c0_0 = arith.constant 0 : index
    %0 = vector.load %arg1[%c0, %c0_0] : memref<8x256xbf16, #tpu.memory_space<vmem>>, vector<8x256xbf16>
    %c0_1 = arith.constant 0 : index
    %c0_2 = arith.constant 0 : index
    %1 = vector.load %arg4[%c0_1, %c0_2] : memref<256x128xbf16, #tpu.memory_space<vmem>>, vector<256x128xbf16>
    %cst = arith.constant dense<0.000000e+00> : vector<8x128xf32>
    %2 = tpu.matmul %0, %1, %cst {dimension_numbers = #tpu.dot_dimension_numbers<[1], [0], [0], [1], [0, 0, 1, 1], [], []>} : vector<8x256xbf16>, vector<256x128xbf16>, vector<8x128xf32> -> vector<8x128xf32>
    %c0_3 = arith.constant 0 : index
    %c0_4 = arith.constant 0 : index
    %3 = vector.load %arg5[%c0_3, %c0_4] : memref<1x128xf32, #tpu.memory_space<vmem>>, vector<1x128xf32>
    %4 = vector.broadcast %3 : vector<1x128xf32> to vector<8x128xf32>
    %5 = arith.addf %2, %4 : vector<8x128xf32>
    %6 = math.tanh %5 : vector<8x128xf32>
    %c0_5 = arith.constant 0 : index
    %c0_6 = arith.constant 0 : index
    %7 = vector.load %arg6[%c0_5, %c0_6] : memref<128x8xf32, #tpu.memory_space<vmem>>, vector<128x8xf32>
    %cst_7 = arith.constant dense<0.000000e+00> : vector<8x8xf32>
    %8 = tpu.matmul %6, %7, %cst_7 {dimension_numbers = #tpu.dot_dimension_numbers<[1], [0], [0], [1], [0, 0, 1, 1], [], []>} : vector<8x128xf32>, vector<128x8xf32>, vector<8x8xf32> -> vector<8x8xf32>
    %cst_8 = arith.constant dense<0xFF800000> : vector<8xf32>
    %9 = vector.multi_reduction <maximumf>, %8, %cst_8 [1] : vector<8x8xf32> to vector<8xf32>
    %10 = vector.shape_cast %9 : vector<8xf32> to vector<8x1xf32>
    %11 = vector.broadcast %10 : vector<8x1xf32> to vector<8x8xf32>
    %12 = arith.subf %8, %11 : vector<8x8xf32>
    %13 = math.exp %12 : vector<8x8xf32>
    %cst_9 = arith.constant dense<0.000000e+00> : vector<8xf32>
    %14 = vector.multi_reduction <add>, %13, %cst_9 [1] : vector<8x8xf32> to vector<8xf32>
    %15 = vector.shape_cast %14 : vector<8xf32> to vector<8x1xf32>
    %16 = vector.broadcast %15 : vector<8x1xf32> to vector<8x8xf32>
    %17 = arith.divf %13, %16 : vector<8x8xf32>
    %c0_10 = arith.constant 0 : index
    %c0_11 = arith.constant 0 : index
    %18 = vector.load %arg2[%c0_10, %c0_11] : memref<8x1xf32, #tpu.memory_space<vmem>>, vector<8x1xf32>
    %19 = vector.broadcast %18 : vector<8x1xf32> to vector<8x8xf32>
    %20 = arith.mulf %17, %19 : vector<8x8xf32>
    %21 = arith.truncf %20 : vector<8x8xf32> to vector<8x8xbf16>
    %c0_12 = arith.constant 0 : index
    %c0_13 = arith.constant 0 : index
    %22 = vector.load %arg7[%c0_12, %c0_13] : memref<8x256xbf16, #tpu.memory_space<vmem>>, vector<8x256xbf16>
    %cst_14 = arith.constant dense<0.000000e+00> : vector<8x256xf32>
    %23 = tpu.matmul %21, %22, %cst_14 {dimension_numbers = #tpu.dot_dimension_numbers<[1], [0], [0], [1], [0, 0, 1, 1], [], []>} : vector<8x8xbf16>, vector<8x256xbf16>, vector<8x256xf32> -> vector<8x256xf32>
    %24 = arith.truncf %23 : vector<8x256xf32> to vector<8x256xbf16>
    %25 = arith.mulf %24, %0 : vector<8x256xbf16>
    %c0_15 = arith.constant 0 : index
    %c0_16 = arith.constant 0 : index
    %26 = vector.load %arg8[%c0_15, %c0_16] : memref<256x32xbf16, #tpu.memory_space<vmem>>, vector<256x32xbf16>
    %cst_17 = arith.constant dense<0.000000e+00> : vector<8x32xf32>
    %27 = tpu.matmul %25, %26, %cst_17 {dimension_numbers = #tpu.dot_dimension_numbers<[1], [0], [0], [1], [0, 0, 1, 1], [], []>} : vector<8x256xbf16>, vector<256x32xbf16>, vector<8x32xf32> -> vector<8x32xf32>
    %cst_18 = arith.constant 0.000000e+00 : f32
    %28 = vector.broadcast %cst_18 : f32 to vector<8x32xf32>
    %29 = arith.maximumf %27, %28 : vector<8x32xf32>
    %c0_19 = arith.constant 0 : index
    %c0_20 = arith.constant 0 : index
    %30 = vector.load %arg3[%c0_19, %c0_20] : memref<8x32xbf16, #tpu.memory_space<vmem>>, vector<8x32xbf16>
    %31 = arith.extf %30 : vector<8x32xbf16> to vector<8x32xf32>
    %32 = arith.mulf %29, %31 : vector<8x32xf32>
    %c0_21 = arith.constant 0 : index
    %c0_22 = arith.constant 0 : index
    %33 = vector.load %arg9[%c0_21, %c0_22] : memref<8x32xf32, #tpu.memory_space<vmem>>, vector<8x32xf32>
    tpu.vector_store %arg9[%c0_21, %c0_22], %32 {strides = array<i32>} : memref<8x32xf32, #tpu.memory_space<vmem>>, vector<8x32xf32>,
    return
  }
  func.func @transform_0(%arg0: i32) -> (i32, i32) {
    %c0_i32 = arith.constant 0 : i32
    %c0_i32_0 = arith.constant 0 : i32
    return %arg0, %c0_i32 : i32, i32
  }
  func.func @transform_1(%arg0: i32) -> (i32, i32) {
    %c0_i32 = arith.constant 0 : i32
    %c0_i32_0 = arith.constant 0 : i32
    return %arg0, %c0_i32 : i32, i32
  }
  func.func @transform_2(%arg0: i32) -> (i32, i32) {
    %c0_i32 = arith.constant 0 : i32
    %c0_i32_0 = arith.constant 0 : i32
    return %arg0, %c0_i32 : i32, i32
  }
  func.func @transform_3(%arg0: i32) -> (i32, i32) {
    %c0_i32 = arith.constant 0 : i32
    %c0_i32_0 = arith.constant 0 : i32
    %c0_i32_1 = arith.constant 0 : i32
    return %c0_i32, %c0_i32_0 : i32, i32
  }
  func.func @transform_4(%arg0: i32) -> (i32, i32) {
    %c0_i32 = arith.constant 0 : i32
    %c0_i32_0 = arith.constant 0 : i32
    %c0_i32_1 = arith.constant 0 : i32
    return %c0_i32, %c0_i32_0 : i32, i32
  }
  func.func @transform_5(%arg0: i32) -> (i32, i32) {
    %c0_i32 = arith.constant 0 : i32
    %c0_i32_0 = arith.constant 0 : i32
    %c0_i32_1 = arith.constant 0 : i32
    return %c0_i32, %c0_i32_0 : i32, i32
  }
  func.func @transform_6(%arg0: i32) -> (i32, i32) {
    %c0_i32 = arith.constant 0 : i32
    %c0_i32_0 = arith.constant 0 : i32
    %c0_i32_1 = arith.constant 0 : i32
    return %c0_i32, %c0_i32_0 : i32, i32
  }
  func.func @transform_7(%arg0: i32) -> (i32, i32) {
    %c0_i32 = arith.constant 0 : i32
    %c0_i32_0 = arith.constant 0 : i32
    %c0_i32_1 = arith.constant 0 : i32
    return %c0_i32, %c0_i32_0 : i32, i32
  }
  func.func @transform_8(%arg0: i32) -> (i32, i32) {
    %c0_i32 = arith.constant 0 : i32
    %c0_i32_0 = arith.constant 0 : i32
    return %arg0, %c0_i32 : i32, i32
  }
}

</mosaic_0001>

<llo_original>
// kernel: mean_aggregator_attention.1
$region0: #{mean_aggregator_attention.1}
  #allocation0 [shape = 'u32[]', space=smem, size = 0x4, offset = 0x4, fixed_abs, tag = 'smem constant byte address 0x4 - core index']
  #allocation1 [shape = 'u32[144,128]{1,0:T(1,128)}', space=vmem, size = 0x12000, scoped, tag = 'internal scratch']
  %s0 = inlined_call_operand.vmem [shape: bf16[16,256], index: 0, kind: input, shape index: {}]
  %s1 = inlined_call_operand.vmem [shape: f32[16,1], index: 1, kind: input, shape index: {}]
  %s2 = inlined_call_operand.vmem [shape: bf16[16,32], index: 2, kind: input, shape index: {}]
  %s3 = inlined_call_operand.vmem [shape: bf16[256,128], index: 3, kind: input, shape index: {}]
  %s4 = inlined_call_operand.vmem [shape: f32[1,128], index: 4, kind: input, shape index: {}]
  %s5 = inlined_call_operand.vmem [shape: f32[128,8], index: 5, kind: input, shape index: {}]
  %s6 = inlined_call_operand.vmem [shape: bf16[8,256], index: 6, kind: input, shape index: {}]
  %s7 = inlined_call_operand.vmem [shape: bf16[256,32], index: 7, kind: input, shape index: {}]
  %s8 = inlined_call_operand.hbm [shape: f32[16,32], index: 8, kind: output, shape index: {}]
  %s9 = sld [smem:[#allocation0]]
  $region65: #{mean_aggregator_attention.1} parent=0
    _
  %s11 = ssub.s32 1, %s9
  %s12 = scalar_select 0, %s11, %s9
  $region1: #{mean_aggregator_attention.1} parent=0
    #allocation2 [shape = 'u8[8192]{0}', space=vmem, size = 0x2000, scoped, tag = 'output window, operand 0']
    #allocation3 [shape = 's32[2]{0}', space=sflag, size = 0x8, scoped, tag = 'scoped memory for mean_aggregator_attention.1']
    %13 = vsyncpa [#allocation3], 0
    %s14 = scalar_lea.sflag [#allocation3], 1
    %15 = vsyncpa %s14, 0
    loop: start=0, step=1, limit=4
    $region2: #{mean_aggregator_attention.1} parent=1 // loop_pre_header
      _
    $region3: #{mean_aggregator_attention.1} parent=1 // loop_header
      %s17 = sphi 0, %s21
      %p18 = scmp.ge.s32.totalorder %s17, 4
      %s27 = sphi 0, %s29
      %s30 = sphi 0, %s27
      %s31 = sphi 0, %s30
      %s47 = sphi 0, %s31
      %s53 = sphi 0, %s55
      %s56 = sphi 0, %s53
      %s57 = sphi 0, %s56
      %s73 = sphi 0, %s57
      %s79 = sphi 0, %s81
      %s82 = sphi 0, %s79
      %s83 = sphi 0, %s82
      %s99 = sphi 0, %s83
      %s103 = sphi 0, %s103
      %s105 = sphi 0, %s103
      %s106 = sphi 0, %s105
      %s120 = sphi 0, %s106
      %s124 = sphi 0, %s124
      %s126 = sphi 0, %s124
      %s127 = sphi 0, %s126
      %s141 = sphi 0, %s127
      %s145 = sphi 0, %s145
      %s147 = sphi 0, %s145
      %s148 = sphi 0, %s147
      %s162 = sphi 0, %s148
      %s166 = sphi 0, %s166
      %s168 = sphi 0, %s166
      %s169 = sphi 0, %s168
      %s183 = sphi 0, %s169
      %s187 = sphi 0, %s187
      %s189 = sphi 0, %s187
      %s190 = sphi 0, %s189
      %s204 = sphi 0, %s190
      %s210 = sphi 0, %s212
      %s213 = sphi 0, %s210
      %s214 = sphi 0, %s213
      %s230 = sphi 0, %s214
    $region4: #{mean_aggregator_attention.1} parent=1 // loop_header_branch
      %20 = sbr.rel (%p18) target = $region8
    $region5: #{mean_aggregator_attention.1} parent=1 // loop_body
      %s22 = ssub.s32 %s17, 1
      %s23 = ssub.s32 %s17, 2
      %s24 = sadd.s32 %s17, 1
      %s25 = ssub.s32 %s17, %s24
      %p26 = scmp.eq.s32.totalorder %s25, 0
      %s28 = sadd.s32 %s27, 1
      %s29 = scalar_select %p26, %s27, %s28
      %p32 = pneg %p26
      %p33 = scmp.eq.s32.totalorder %s17, 1
      %p34 = por %p32, %p33
      %p35 = scmp.ne.s32.totalorder %s27, %s30
      %p36 = scmp.eq.s32.totalorder %s17, 0
      %p37 = por %p35, %p36
      %p38 = scmp.ne.s32.totalorder %s27, %s30
      %p39 = scmp.eq.s32.totalorder %s22, 1
      %p40 = por %p38, %p39
      %p41 = scmp.ne.s32.totalorder %s30, %s31
      %p42 = scmp.eq.s32.totalorder %s22, 0
      %p43 = por %p41, %p42
      %p44 = scmp.ne.s32.totalorder %s30, %s31
      %p45 = scmp.eq.s32.totalorder %s23, 1
      %p46 = por %p44, %p45
      %p48 = scmp.ne.s32.totalorder %s31, %s47
      %p49 = scmp.eq.s32.totalorder %s23, 0
      %p50 = por %p48, %p49
      %s51 = ssub.s32 %s17, %s24
      %p52 = scmp.eq.s32.totalorder %s51, 0
      %s54 = sadd.s32 %s53, 1
      %s55 = scalar_select %p52, %s53, %s54
      %p58 = pneg %p52
      %p59 = scmp.eq.s32.totalorder %s17, 1
      %p60 = por %p58, %p59
      %p61 = scmp.ne.s32.totalorder %s53, %s56
      %p62 = scmp.eq.s32.totalorder %s17, 0
      %p63 = por %p61, %p62
      %p64 = scmp.ne.s32.totalorder %s53, %s56
      %p65 = scmp.eq.s32.totalorder %s22, 1
      %p66 = por %p64, %p65
      %p67 = scmp.ne.s32.totalorder %s56, %s57
      %p68 = scmp.eq.s32.totalorder %s22, 0
      %p69 = por %p67, %p68
      %p70 = scmp.ne.s32.totalorder %s56, %s57
      %p71 = scmp.eq.s32.totalorder %s23, 1
      %p72 = por %p70, %p71
      %p74 = scmp.ne.s32.totalorder %s57, %s73
      %p75 = scmp.eq.s32.totalorder %s23, 0
      %p76 = por %p74, %p75
      %s77 = ssub.s32 %s17, %s24
      %p78 = scmp.eq.s32.totalorder %s77, 0
      %s80 = sadd.s32 %s79, 1
      %s81 = scalar_select %p78, %s79, %s80
      %p84 = pneg %p78
      %p85 = scmp.eq.s32.totalorder %s17, 1
      %p86 = por %p84, %p85
      %p87 = scmp.ne.s32.totalorder %s79, %s82
      %p88 = scmp.eq.s32.totalorder %s17, 0
      %p89 = por %p87, %p88
      %p90 = scmp.ne.s32.totalorder %s79, %s82
      %p91 = scmp.eq.s32.totalorder %s22, 1
      %p92 = por %p90, %p91
      %p93 = scmp.ne.s32.totalorder %s82, %s83
      %p94 = scmp.eq.s32.totalorder %s22, 0
      %p95 = por %p93, %p94
      %p96 = scmp.ne.s32.totalorder %s82, %s83
      %p97 = scmp.eq.s32.totalorder %s23, 1
      %p98 = por %p96, %p97
      %p100 = scmp.ne.s32.totalorder %s83, %s99
      %p101 = scmp.eq.s32.totalorder %s23, 0
      %p102 = por %p100, %p101
      %s104 = sadd.s32 %s103, 1
      %p107 = scmp.eq.s32.totalorder %s17, 1
      %p108 = scmp.ne.s32.totalorder %s103, %s105
      %p109 = scmp.eq.s32.totalorder %s17, 0
      %p110 = por %p108, %p109
      %p111 = scmp.ne.s32.totalorder %s103, %s105
      %p112 = scmp.eq.s32.totalorder %s22, 1
      %p113 = por %p111, %p112
      %p114 = scmp.ne.s32.totalorder %s105, %s106
      %p115 = scmp.eq.s32.totalorder %s22, 0
      %p116 = por %p114, %p115
      %p117 = scmp.ne.s32.totalorder %s105, %s106
      %p118 = scmp.eq.s32.totalorder %s23, 1
      %p119 = por %p117, %p118
      %p121 = scmp.ne.s32.totalorder %s106, %s120
      %p122 = scmp.eq.s32.totalorder %s23, 0
      %p123 = por %p121, %p122
      %s125 = sadd.s32 %s124, 1
      %p128 = scmp.eq.s32.totalorder %s17, 1
      %p129 = scmp.ne.s32.totalorder %s124, %s126
      %p130 = scmp.eq.s32.totalorder %s17, 0
      %p131 = por %p129, %p130
      %p132 = scmp.ne.s32.totalorder %s124, %s126
      %p133 = scmp.eq.s32.totalorder %s22, 1
      %p134 = por %p132, %p133
      %p135 = scmp.ne.s32.totalorder %s126, %s127
      %p136 = scmp.eq.s32.totalorder %s22, 0
      %p137 = por %p135, %p136
      %p138 = scmp.ne.s32.totalorder %s126, %s127
      %p139 = scmp.eq.s32.totalorder %s23, 1
      %p140 = por %p138, %p139
      %p142 = scmp.ne.s32.totalorder %s127, %s141
      %p143 = scmp.eq.s32.totalorder %s23, 0
      %p144 = por %p142, %p143
      %s146 = sadd.s32 %s145, 1
      %p149 = scmp.eq.s32.totalorder %s17, 1
      %p150 = scmp.ne.s32.totalorder %s145, %s147
      %p151 = scmp.eq.s32.totalorder %s17, 0
      %p152 = por %p150, %p151
      %p153 = scmp.ne.s32.totalorder %s145, %s147
      %p154 = scmp.eq.s32.totalorder %s22, 1
      %p155 = por %p153, %p154
      %p156 = scmp.ne.s32.totalorder %s147, %s148
      %p157 = scmp.eq.s32.totalorder %s22, 0
      %p158 = por %p156, %p157
      %p159 = scmp.ne.s32.totalorder %s147, %s148
      %p160 = scmp.eq.s32.totalorder %s23, 1
      %p161 = por %p159, %p160
      %p163 = scmp.ne.s32.totalorder %s148, %s162
      %p164 = scmp.eq.s32.totalorder %s23, 0
      %p165 = por %p163, %p164
      %s167 = sadd.s32 %s166, 1
      %p170 = scmp.eq.s32.totalorder %s17, 1
      %p171 = scmp.ne.s32.totalorder %s166, %s168
      %p172 = scmp.eq.s32.totalorder %s17, 0
      %p173 = por %p171, %p172
      %p174 = scmp.ne.s32.totalorder %s166, %s168
      %p175 = scmp.eq.s32.totalorder %s22, 1
      %p176 = por %p174, %p175
      %p177 = scmp.ne.s32.totalorder %s168, %s169
      %p178 = scmp.eq.s32.totalorder %s22, 0
      %p179 = por %p177, %p178
      %p180 = scmp.ne.s32.totalorder %s168, %s169
      %p181 = scmp.eq.s32.totalorder %s23, 1
      %p182 = por %p180, %p181
      %p184 = scmp.ne.s32.totalorder %s169, %s183
      %p185 = scmp.eq.s32.totalorder %s23, 0
      %p186 = por %p184, %p185
      %s188 = sadd.s32 %s187, 1
      %p191 = scmp.eq.s32.totalorder %s17, 1
      %p192 = scmp.ne.s32.totalorder %s187, %s189
      %p193 = scmp.eq.s32.totalorder %s17, 0
      %p194 = por %p192, %p193
      %p195 = scmp.ne.s32.totalorder %s187, %s189
      %p196 = scmp.eq.s32.totalorder %s22, 1
      %p197 = por %p195, %p196
      %p198 = scmp.ne.s32.totalorder %s189, %s190
      %p199 = scmp.eq.s32.totalorder %s22, 0
      %p200 = por %p198, %p199
      %p201 = scmp.ne.s32.totalorder %s189, %s190
      %p202 = scmp.eq.s32.totalorder %s23, 1
      %p203 = por %p201, %p202
      %p205 = scmp.ne.s32.totalorder %s190, %s204
      %p206 = scmp.eq.s32.totalorder %s23, 0
      %p207 = por %p205, %p206
      %s208 = ssub.s32 %s17, %s24
      %p209 = scmp.eq.s32.totalorder %s208, 0
      %s211 = sadd.s32 %s210, 1
      %s212 = scalar_select %p209, %s210, %s211
      %p215 = pneg %p209
      %p216 = scmp.eq.s32.totalorder %s17, 1
      %p217 = por %p215, %p216
      %p218 = scmp.ne.s32.totalorder %s210, %s213
      %p219 = scmp.eq.s32.totalorder %s17, 0
      %p220 = por %p218, %p219
      %p221 = scmp.ne.s32.totalorder %s210, %s213
      %p222 = scmp.eq.s32.totalorder %s22, 1
      %p223 = por %p221, %p222
      %p224 = scmp.ne.s32.totalorder %s213, %s214
      %p225 = scmp.eq.s32.totalorder %s22, 0
      %p226 = por %p224, %p225
      %p227 = scmp.ne.s32.totalorder %s213, %s214
      %p228 = scmp.eq.s32.totalorder %s23, 1
      %p229 = por %p227, %p228
      %p231 = scmp.ne.s32.totalorder %s214, %s230
      %p232 = scmp.eq.s32.totalorder %s23, 0
      %p233 = por %p231, %p232
      %p234 = scmp.le.s32.totalorder 1, %s17
      %p235 = scmp.lt.s32.totalorder %s17, 3
      %p236 = pnand %p234, %p235
      %p237 = pneg %p236
      // Predicated region
      $region9: #{mean_aggregator_attention.1} parent=5 // pred_check
        _
      $region10: #{mean_aggregator_attention.1} parent=5 // pred_check_branch
        %239 = sbr.rel (%p236) target = $region12
      $region11: #{mean_aggregator_attention.1} parent=5 // pred_region
        %s240 = ssub.s32 %s17, 1
        // Predicated region
        $region13: #{mean_aggregator_attention.1} parent=11 // pred_check
          %p241 = pneg %p116
        $region14: #{mean_aggregator_attention.1} parent=11 // pred_check_branch
          %243 = sbr.rel (%p241) target = $region16
        $region15: #{mean_aggregator_attention.1} parent=11 // pred_region
          _
        $region16: #{mean_aggregator_attention.1} parent=11 // pred_fallthru
          _
        // Predicated region
        $region17: #{mean_aggregator_attention.1} parent=11 // pred_check
          %p244 = pneg %p137
        $region18: #{mean_aggregator_attention.1} parent=11 // pred_check_branch
          %246 = sbr.rel (%p244) target = $region20
        $region19: #{mean_aggregator_attention.1} parent=11 // pred_region
          _
        $region20: #{mean_aggregator_attention.1} parent=11 // pred_fallthru
          _
        // Predicated region
        $region21: #{mean_aggregator_attention.1} parent=11 // pred_check
          %p247 = pneg %p158
        $region22: #{mean_aggregator_attention.1} parent=11 // pred_check_branch
          %249 = sbr.rel (%p247) target = $region24
        $region23: #{mean_aggregator_attention.1} parent=11 // pred_region
          _
        $region24: #{mean_aggregator_attention.1} parent=11 // pred_fallthru
          _
        // Predicated region
        $region25: #{mean_aggregator_attention.1} parent=11 // pred_check
          %p250 = pneg %p179
        $region26: #{mean_aggregator_attention.1} parent=11 // pred_check_branch
          %252 = sbr.rel (%p250) target = $region28
        $region27: #{mean_aggregator_attention.1} parent=11 // pred_region
          _
        $region28: #{mean_aggregator_attention.1} parent=11 // pred_fallthru
          _
        // Predicated region
        $region29: #{mean_aggregator_attention.1} parent=11 // pred_check
          %p253 = pneg %p200
        $region30: #{mean_aggregator_attention.1} parent=11 // pred_check_branch
          %255 = sbr.rel (%p253) target = $region32
        $region31: #{mean_aggregator_attention.1} parent=11 // pred_region
          _
        $region32: #{mean_aggregator_attention.1} parent=11 // pred_fallthru
          _
      $region12: #{mean_aggregator_attention.1} parent=5 // pred_fallthru
        _
      %p256 = scmp.lt.s32.totalorder %s17, 2
      // Predicated region
      $region33: #{mean_aggregator_attention.1} parent=5 // pred_check
        %p257 = pneg %p256
      $region34: #{mean_aggregator_attention.1} parent=5 // pred_check_branch
        %259 = sbr.rel (%p257) target = $region36
      $region35: #{mean_aggregator_attention.1} parent=5 // pred_region
        // Predicated region
        $region37: #{mean_aggregator_attention.1} parent=35 // pred_check
          %p260 = pneg %p37
        $region38: #{mean_aggregator_attention.1} parent=35 // pred_check_branch
          %262 = sbr.rel (%p260) target = $region40
        $region39: #{mean_aggregator_attention.1} parent=35 // pred_region
          %p263 = scmp.lt.s32.totalorder %s17, 1
          %s264 = scalar_select %p263, %s17, 1
          %s265 = smul.addr %s264, 2
          %s266 = smul.addr %s265, 4
          %s267 = scalar_lea.vmem %s0, %s266
        $region40: #{mean_aggregator_attention.1} parent=35 // pred_fallthru
          _
        // Predicated region
        $region41: #{mean_aggregator_attention.1} parent=35 // pred_check
          %p268 = pneg %p63
        $region42: #{mean_aggregator_attention.1} parent=35 // pred_check_branch
          %270 = sbr.rel (%p268) target = $region44
        $region43: #{mean_aggregator_attention.1} parent=35 // pred_region
          %p271 = scmp.lt.s32.totalorder %s17, 1
          %s272 = scalar_select %p271, %s17, 1
          %s273 = smul.addr %s272, 8
          %s274 = scalar_lea.vmem %s1, %s273
        $region44: #{mean_aggregator_attention.1} parent=35 // pred_fallthru
          _
        // Predicated region
        $region45: #{mean_aggregator_attention.1} parent=35 // pred_check
          %p275 = pneg %p89
        $region46: #{mean_aggregator_attention.1} parent=35 // pred_check_branch
          %277 = sbr.rel (%p275) target = $region48
        $region47: #{mean_aggregator_attention.1} parent=35 // pred_region
          %p278 = scmp.lt.s32.totalorder %s17, 1
          %s279 = scalar_select %p278, %s17, 1
          %s280 = smul.addr %s279, 4
          %s281 = scalar_lea.vmem %s2, %s280
        $region48: #{mean_aggregator_attention.1} parent=35 // pred_fallthru
          _
      $region36: #{mean_aggregator_attention.1} parent=5 // pred_fallthru
        _
      %p282 = scmp.le.s32.totalorder 1, %s17
      %p283 = scmp.lt.s32.totalorder %s17, 3
      %p284 = pnand %p282, %p283
      %p285 = pneg %p284
      // Predicated region
      $region49: #{mean_aggregator_attention.1} parent=5 // pred_check
        _
      $region50: #{mean_aggregator_attention.1} parent=5 // pred_check_branch
        %287 = sbr.rel (%p284) target = $region52
      $region51: #{mean_aggregator_attention.1} parent=5 // pred_region
        %s288 = ssub.s32 %s17, 1
        %p289 = scmp.lt.s32.totalorder %s22, 1
        %s290 = scalar_select %p289, %s22, 1
        %s291 = smul.addr %s290, 2
        %s292 = smul.addr %s291, 4
        %s293 = scalar_lea.vmem %s0, %s292
        %p294 = pneg %p43
        %p295 = pneg %p40
        %p296 = scmp.lt.s32.totalorder %s22, 1
        %s297 = scalar_select %p296, %s22, 1
        %s298 = smul.addr %s297, 8
        %s299 = scalar_lea.vmem %s1, %s298
        %p300 = pneg %p69
        %p301 = pneg %p66
        %p302 = scmp.lt.s32.totalorder %s22, 1
        %s303 = scalar_select %p302, %s22, 1
        %s304 = smul.addr %s303, 4
        %s305 = scalar_lea.vmem %s2, %s304
        %p306 = pneg %p95
        %p307 = pneg %p92
        %p308 = pneg %p116
        %p309 = pneg %p113
        %p310 = pneg %p137
        %p311 = pneg %p134
        %p312 = pneg %p158
        %p313 = pneg %p155
        %p314 = pneg %p179
        %p315 = pneg %p176
        %p316 = pneg %p200
        %p317 = pneg %p197
        %p318 = pneg %p226
        %p319 = pneg %p223
        %s320 = sand.u32 %s213, 1
        %s321 = scalar_lea.sflag [#allocation3], %s320
        %s322 = sand.u32 %s213, 1
        %s323 = smul.addr %s322, 8
        %s324 = scalar_lea.vmem [#allocation2], %s323
        %p325 = scmp.lt.s32.totalorder %s22, 1
        %s326 = scalar_select %p325, %s22, 1
        %s327 = smul.addr %s326, 2
        %s328 = smul.addr %s327, 4
        %s329 = scalar_lea.vmem %s0, %s328
        %p330 = scmp.lt.s32.totalorder %s22, 1
        %s331 = scalar_select %p330, %s22, 1
        %s332 = smul.addr %s331, 8
        %s333 = scalar_lea.vmem %s1, %s332
        %p334 = scmp.lt.s32.totalorder %s22, 1
        %s335 = scalar_select %p334, %s22, 1
        %s336 = smul.addr %s335, 4
        %s337 = scalar_lea.vmem %s2, %s336
        %v339 = vld [vmem:[%s329] sm:$0xff]
        %v340 = vld [vmem:[%s3] sm:$0xf]
        %v341 = vld [vmem:[%s3 + $0x4] sm:$0xf]
        %v342 = vld [vmem:[%s3 + $0x8] sm:$0xf]
        %v343 = vld [vmem:[%s3 + $0xc] sm:$0xf]
        %v344 = vld [vmem:[%s3 + $0x10] sm:$0xf]
        %v345 = vld [vmem:[%s3 + $0x14] sm:$0xf]
        %v346 = vld [vmem:[%s3 + $0x18] sm:$0xf]
        %v347 = vld [vmem:[%s3 + $0x1c] sm:$0xf]
        %v348 = vld [vmem:[%s3 + $0x20] sm:$0xf]
        %v349 = vld [vmem:[%s3 + $0x24] sm:$0xf]
        %v350 = vld [vmem:[%s3 + $0x28] sm:$0xf]
        %v351 = vld [vmem:[%s3 + $0x2c] sm:$0xf]
        %v352 = vld [vmem:[%s3 + $0x30] sm:$0xf]
        %v353 = vld [vmem:[%s3 + $0x34] sm:$0xf]
        %v354 = vld [vmem:[%s3 + $0x38] sm:$0xf]
        %v355 = vld [vmem:[%s3 + $0x3c] sm:$0xf]
        %v356 = vld [vmem:[%s3 + $0x40] sm:$0xf]
        %v357 = vld [vmem:[%s3 + $0x44] sm:$0xf]
        %v358 = vld [vmem:[%s3 + $0x48] sm:$0xf]
        %v359 = vld [vmem:[%s3 + $0x4c] sm:$0xf]
        %v360 = vld [vmem:[%s3 + $0x50] sm:$0xf]
        %v361 = vld [vmem:[%s3 + $0x54] sm:$0xf]
        %v362 = vld [vmem:[%s3 + $0x58] sm:$0xf]
        %v363 = vld [vmem:[%s3 + $0x5c] sm:$0xf]
        %v364 = vld [vmem:[%s3 + $0x60] sm:$0xf]
        %v365 = vld [vmem:[%s3 + $0x64] sm:$0xf]
        %v366 = vld [vmem:[%s3 + $0x68] sm:$0xf]
        %v367 = vld [vmem:[%s3 + $0x6c] sm:$0xf]
        %v368 = vld [vmem:[%s3 + $0x70] sm:$0xf]
        %v369 = vld [vmem:[%s3 + $0x74] sm:$0xf]
        %v370 = vld [vmem:[%s3 + $0x78] sm:$0xf]
        %v371 = vld [vmem:[%s3 + $0x7c] sm:$0xf]
        %v372 = vld [vmem:[%s4] sm:$0x1]
        %v374 = vlaneseq
        %v375 = vshrl.u32 %v374, 7
        %v376 = vsub.s32 0, %v375
        %v377 = vrot.slane %v372, %v376
        %v380 = vunpack.c.l.b16 %v339
        %v381 = vunpack.c.h.b16 %v339
        %v382 = vpack.c.b16 %v380, %v380
        %v383 = vpack.c.b16 %v381, %v381
        %v418 = vunpack.c.l.b16 %v340
        %v419 = vunpack.c.l.b16 %v341
        %v420 = vunpack.c.l.b16 %v342
        %v421 = vunpack.c.l.b16 %v343
        %v422 = vunpack.c.l.b16 %v344
        %v423 = vunpack.c.l.b16 %v345
        %v424 = vunpack.c.l.b16 %v346
        %v425 = vunpack.c.l.b16 %v347
        %v426 = vunpack.c.l.b16 %v348
        %v427 = vunpack.c.l.b16 %v349
        %v428 = vunpack.c.l.b16 %v350
        %v429 = vunpack.c.l.b16 %v351
        %v430 = vunpack.c.l.b16 %v352
        %v431 = vunpack.c.l.b16 %v353
        %v432 = vunpack.c.l.b16 %v354
        %v433 = vunpack.c.l.b16 %v355
        %v434 = vunpack.c.l.b16 %v356
        %v435 = vunpack.c.l.b16 %v357
        %v436 = vunpack.c.l.b16 %v358
        %v437 = vunpack.c.l.b16 %v359
        %v438 = vunpack.c.l.b16 %v360
        %v439 = vunpack.c.l.b16 %v361
        %v440 = vunpack.c.l.b16 %v362
        %v441 = vunpack.c.l.b16 %v363
        %v442 = vunpack.c.l.b16 %v364
        %v443 = vunpack.c.l.b16 %v365
        %v444 = vunpack.c.l.b16 %v366
        %v445 = vunpack.c.l.b16 %v367
        %v446 = vunpack.c.l.b16 %v368
        %v447 = vunpack.c.l.b16 %v369
        %v448 = vunpack.c.l.b16 %v370
        %v449 = vunpack.c.l.b16 %v371
        %v450 = vpack.c.b16 %v419, %v418
        %v451 = vpack.c.b16 %v421, %v420
        %v452 = vpack.c.b16 %v423, %v422
        %v453 = vpack.c.b16 %v425, %v424
        %v454 = vpack.c.b16 %v427, %v426
        %v455 = vpack.c.b16 %v429, %v428
        %v456 = vpack.c.b16 %v431, %v430
        %v457 = vpack.c.b16 %v433, %v432
        %v458 = vpack.c.b16 %v435, %v434
        %v459 = vpack.c.b16 %v437, %v436
        %v460 = vpack.c.b16 %v439, %v438
        %v461 = vpack.c.b16 %v441, %v440
        %v462 = vpack.c.b16 %v443, %v442
        %v463 = vpack.c.b16 %v445, %v444
        %v464 = vpack.c.b16 %v447, %v446
        %v465 = vpack.c.b16 %v449, %v448
        %482 = vmatprep.subr.bf16.mxu0 0
        %483 = vmatpush1.bf16.msra.mxu0 %v457
        %484 = vmatprep.subr.bf16.mxu0 0
        %485 = vmatpush1.bf16.msra.mxu0 %v456
        %486 = vmatprep.subr.bf16.mxu0 0
        %487 = vmatpush1.bf16.msra.mxu0 %v455
        %488 = vmatprep.subr.bf16.mxu0 0
        %489 = vmatpush1.bf16.msra.mxu0 %v454
        %490 = vmatprep.subr.bf16.mxu0 0
        %491 = vmatpush1.bf16.msra.mxu0 %v453
        %492 = vmatprep.subr.bf16.mxu0 0
        %493 = vmatpush1.bf16.msra.mxu0 %v452
        %494 = vmatprep.subr.bf16.mxu0 0
        %495 = vmatpush1.bf16.msra.mxu0 %v451
        %496 = vmatprep.subr.bf16.mxu0 0
        %497 = vmatpush1.bf16.msra.mxu0 %v450
        %498 = vmatprep.subr.bf16.mxu0 0
        %499 = vmatpush2.bf16.msra.mxu0 %v465
        %500 = vmatprep.subr.bf16.mxu0 0
        %501 = vmatpush2.bf16.msra.mxu0 %v464
        %502 = vmatprep.subr.bf16.mxu0 0
        %503 = vmatpush2.bf16.msra.mxu0 %v463
        %504 = vmatprep.subr.bf16.mxu0 0
        %505 = vmatpush2.bf16.msra.mxu0 %v462
        %506 = vmatprep.subr.bf16.mxu0 0
        %507 = vmatpush2.bf16.msra.mxu0 %v461
        %508 = vmatprep.subr.bf16.mxu0 0
        %509 = vmatpush2.bf16.msra.mxu0 %v460
        %510 = vmatprep.subr.bf16.mxu0 0
        %511 = vmatpush2.bf16.msra.mxu0 %v459
        %512 = vmatprep.subr.bf16.mxu0 0
        %513 = vmatpush2.bf16.msra.mxu0 %v458
        %514 = vmatprep.mubr.bf16.mxu0 %v383
        %515 = vmatmul.mubr.bf16.gmra.mxu0 %v382
        %v516 = vpop.f32.mrf.mxu0
        %v517 = vadd.f32 %v377, %v516
        %v518 = vpop.f32.mrf.mxu0
        %v519 = vpop.f32.mrf.mxu0
        %v520 = vpop.f32.mrf.mxu0
        %521 = vdwg.mxu0
        %v522 = vtanh.pop %v517
        %v523 = vld [vmem:[%s5] sm:$0xff]
        %v524 = vld [vmem:[%s5 + $0x8] sm:$0xff]
        %v525 = vld [vmem:[%s5 + $0x10] sm:$0xff]
        %v526 = vld [vmem:[%s5 + $0x18] sm:$0xff]
        %v527 = vld [vmem:[%s5 + $0x20] sm:$0xff]
        %v528 = vld [vmem:[%s5 + $0x28] sm:$0xff]
        %v529 = vld [vmem:[%s5 + $0x30] sm:$0xff]
        %v530 = vld [vmem:[%s5 + $0x38] sm:$0xff]
        %v531 = vld [vmem:[%s5 + $0x40] sm:$0xff]
        %v532 = vld [vmem:[%s5 + $0x48] sm:$0xff]
        %v533 = vld [vmem:[%s5 + $0x50] sm:$0xff]
        %v534 = vld [vmem:[%s5 + $0x58] sm:$0xff]
        %v535 = vld [vmem:[%s5 + $0x60] sm:$0xff]
        %v536 = vld [vmem:[%s5 + $0x68] sm:$0xff]
        %v537 = vld [vmem:[%s5 + $0x70] sm:$0xff]
        %v538 = vld [vmem:[%s5 + $0x78] sm:$0xff]
        %539 = vmatprep.subr.mxu0 0.0
        %540 = vmatpush1.msra.mxu0 %v538
        %541 = vmatprep.subr.mxu0 0.0
        %542 = vmatpush1.msra.mxu0 %v537
        %543 = vmatprep.subr.mxu0 0.0
        %544 = vmatpush1.msra.mxu0 %v536
        %545 = vmatprep.subr.mxu0 0.0
        %546 = vmatpush1.msra.mxu0 %v535
        %547 = vmatprep.subr.mxu0 0.0
        %548 = vmatpush1.msra.mxu0 %v534
        %549 = vmatprep.subr.mxu0 0.0
        %550 = vmatpush1.msra.mxu0 %v533
        %551 = vmatprep.subr.mxu0 0.0
        %552 = vmatpush1.msra.mxu0 %v532
        %553 = vmatprep.subr.mxu0 0.0
        %554 = vmatpush1.msra.mxu0 %v531
        %555 = vmatprep.subr.mxu0 0.0
        %556 = vmatpush1.msra.mxu0 %v530
        %557 = vmatprep.subr.mxu0 0.0
        %558 = vmatpush1.msra.mxu0 %v529
        %559 = vmatprep.subr.mxu0 0.0
        %560 = vmatpush1.msra.mxu0 %v528
        %561 = vmatprep.subr.mxu0 0.0
        %562 = vmatpush1.msra.mxu0 %v527
        %563 = vmatprep.subr.mxu0 0.0
        %564 = vmatpush1.msra.mxu0 %v526
        %565 = vmatprep.subr.mxu0 0.0
        %566 = vmatpush1.msra.mxu0 %v525
        %567 = vmatprep.subr.mxu0 0.0
        %568 = vmatpush1.msra.mxu0 %v524
        %569 = vmatprep.subr.mxu0 0.0
        %570 = vmatpush1.msra.mxu0 %v523
        %571 = vmatprep.subr.mxu0 0.0
        %572 = vmatpush2.msra.mxu0 0.0
        %573 = vmatprep.subr.mxu0 0.0
        %574 = vmatpush2.msra.mxu0 0.0
        %575 = vmatprep.subr.mxu0 0.0
        %576 = vmatpush2.msra.mxu0 0.0
        %577 = vmatprep.subr.mxu0 0.0
        %578 = vmatpush2.msra.mxu0 0.0
        %579 = vmatprep.subr.mxu0 0.0
        %580 = vmatpush2.msra.mxu0 0.0
        %581 = vmatprep.subr.mxu0 0.0
        %582 = vmatpush2.msra.mxu0 0.0
        %583 = vmatprep.subr.mxu0 0.0
        %584 = vmatpush2.msra.mxu0 0.0
        %585 = vmatprep.subr.mxu0 0.0
        %586 = vmatpush2.msra.mxu0 0.0
        %587 = vmatprep.subr.mxu0 0.0
        %588 = vmatpush2.msra.mxu0 0.0
        %589 = vmatprep.subr.mxu0 0.0
        %590 = vmatpush2.msra.mxu0 0.0
        %591 = vmatprep.subr.mxu0 0.0
        %592 = vmatpush2.msra.mxu0 0.0
        %593 = vmatprep.subr.mxu0 0.0
        %594 = vmatpush2.msra.mxu0 0.0
        %595 = vmatprep.subr.mxu0 0.0
        %596 = vmatpush2.msra.mxu0 0.0
        %597 = vmatprep.subr.mxu0 0.0
        %598 = vmatpush2.msra.mxu0 0.0
        %599 = vmatprep.subr.mxu0 0.0
        %600 = vmatpush2.msra.mxu0 0.0
        %601 = vmatprep.subr.mxu0 0.0
        %602 = vmatpush2.msra.mxu0 0.0
        %603 = vmatprep.mubr.f32.mxu0 0.0
        %604 = vmatmul.mubr.f32.gmra.mxu0 %v522
        %v605 = vpop.f32.mrf.mxu0
        %v606 = vadd.f32 0.0, %v605
        %v607 = vpop.f32.mrf.mxu0
        %608 = vdwg.mxu0
        %vm609 = vcmask 64512
        %v610 = vsel %vm609, %v606, -inf
        %611 = vmax.xlane.f32.xlu0 %v610
        %v612 = vpop.xlane.xlu0 %611
        %v613 = vsub.f32 %v606, %v612
        %v614 = vmul.f32 %v613, 1.442695
        %v615 = vpow.pop %v614
        %v616 = vsel %vm609, %v615, 0.0
        %617 = vadd.xlane.f32.xlu0 %v616
        %v618 = vpop.xlane.xlu0 %617
        %v619 = vrcp.pop %v618
        %v620 = vmul.f32 %v615, %v619
        %v621 = vld [vmem:[%s333] sm:$0xff]
        %623 = vset.pattern.permute.xlu0 0
        %624 = vperm.xlu0 %623, %v621
        %v625 = vpop.permute.xlu0 %624
        %v627 = vmul.f32 %v620, %v625
        %v628 = vpack.c.bf16 %v627, %v627
        %v629 = vld [vmem:[%s6] sm:$0xff]
        %v631 = vunpack.c.l.b16 %v629
        %v632 = vunpack.c.h.b16 %v629
        %v633 = vpack.c.b16 %v631, %v631
        %v634 = vpack.c.b16 %v632, %v632
        %v636 = vsel %vm609, %v628, 0
        %vm638 = vcmask 1043456
        %v640 = vsel %vm638, %v633, 0
        %v643 = vsel %vm638, %v634, 0
        %645 = vmatprep.subr.bf16.mxu0 0
        %646 = vmatpush1.bf16.msra.mxu0 0
        %647 = vmatprep.subr.bf16.mxu0 0
        %648 = vmatpush1.bf16.msra.mxu0 0
        %649 = vmatprep.subr.bf16.mxu0 0
        %650 = vmatpush1.bf16.msra.mxu0 0
        %651 = vmatprep.subr.bf16.mxu0 0
        %652 = vmatpush1.bf16.msra.mxu0 0
        %653 = vmatprep.subr.bf16.mxu0 0
        %654 = vmatpush1.bf16.msra.mxu0 0
        %655 = vmatprep.subr.bf16.mxu0 0
        %656 = vmatpush1.bf16.msra.mxu0 0
        %657 = vmatprep.subr.bf16.mxu0 0
        %658 = vmatpush1.bf16.msra.mxu0 0
        %659 = vmatprep.subr.bf16.mxu0 %v643
        %660 = vmatpush1.bf16.msra.mxu0 %v640
        %661 = vmatprep.subr.bf16.mxu0 0
        %662 = vmatpush2.bf16.msra.mxu0 0
        %663 = vmatprep.subr.bf16.mxu0 0
        %664 = vmatpush2.bf16.msra.mxu0 0
        %665 = vmatprep.subr.bf16.mxu0 0
        %666 = vmatpush2.bf16.msra.mxu0 0
        %667 = vmatprep.subr.bf16.mxu0 0
        %668 = vmatpush2.bf16.msra.mxu0 0
        %669 = vmatprep.subr.bf16.mxu0 0
        %670 = vmatpush2.bf16.msra.mxu0 0
        %671 = vmatprep.subr.bf16.mxu0 0
        %672 = vmatpush2.bf16.msra.mxu0 0
        %673 = vmatprep.subr.bf16.mxu0 0
        %674 = vmatpush2.bf16.msra.mxu0 0
        %675 = vmatprep.subr.bf16.mxu0 0
        %676 = vmatpush2.bf16.msra.mxu0 0
        %677 = vmatprep.mubr.bf16.mxu0 0
        %678 = vmatmul.mubr.bf16.gmra.mxu0 %v636
        %v679 = vpop.f32.mrf.mxu0
        %v680 = vadd.f32 0.0, %v679
        %v681 = vpop.f32.mrf.mxu0
        %v682 = vadd.f32 0.0, %v681
        %v683 = vpop.f32.mrf.mxu0
        %v684 = vpop.f32.mrf.mxu0
        %685 = vdwg.mxu0
        %v686 = vpack.c.bf16 %v680, %v680
        %v687 = vpack.c.bf16 %v682, %v682
        %v688 = vmul.bf16 %v686, %v382
        %v689 = vmul.bf16 %v687, %v383
        %v690 = vld [vmem:[%s7] sm:$0xf]
        %v691 = vld [vmem:[%s7 + $0x4] sm:$0xf]
        %v692 = vld [vmem:[%s7 + $0x8] sm:$0xf]
        %v693 = vld [vmem:[%s7 + $0xc] sm:$0xf]
        %v694 = vld [vmem:[%s7 + $0x10] sm:$0xf]
        %v695 = vld [vmem:[%s7 + $0x14] sm:$0xf]
        %v696 = vld [vmem:[%s7 + $0x18] sm:$0xf]
        %v697 = vld [vmem:[%s7 + $0x1c] sm:$0xf]
        %v698 = vld [vmem:[%s7 + $0x20] sm:$0xf]
        %v699 = vld [vmem:[%s7 + $0x24] sm:$0xf]
        %v700 = vld [vmem:[%s7 + $0x28] sm:$0xf]
        %v701 = vld [vmem:[%s7 + $0x2c] sm:$0xf]
        %v702 = vld [vmem:[%s7 + $0x30] sm:$0xf]
        %v703 = vld [vmem:[%s7 + $0x34] sm:$0xf]
        %v704 = vld [vmem:[%s7 + $0x38] sm:$0xf]
        %v705 = vld [vmem:[%s7 + $0x3c] sm:$0xf]
        %v706 = vld [vmem:[%s7 + $0x40] sm:$0xf]
        %v707 = vld [vmem:[%s7 + $0x44] sm:$0xf]
        %v708 = vld [vmem:[%s7 + $0x48] sm:$0xf]
        %v709 = vld [vmem:[%s7 + $0x4c] sm:$0xf]
        %v710 = vld [vmem:[%s7 + $0x50] sm:$0xf]
        %v711 = vld [vmem:[%s7 + $0x54] sm:$0xf]
        %v712 = vld [vmem:[%s7 + $0x58] sm:$0xf]
        %v713 = vld [vmem:[%s7 + $0x5c] sm:$0xf]
        %v714 = vld [vmem:[%s7 + $0x60] sm:$0xf]
        %v715 = vld [vmem:[%s7 + $0x64] sm:$0xf]
        %v716 = vld [vmem:[%s7 + $0x68] sm:$0xf]
        %v717 = vld [vmem:[%s7 + $0x6c] sm:$0xf]
        %v718 = vld [vmem:[%s7 + $0x70] sm:$0xf]
        %v719 = vld [vmem:[%s7 + $0x74] sm:$0xf]
        %v720 = vld [vmem:[%s7 + $0x78] sm:$0xf]
        %v721 = vld [vmem:[%s7 + $0x7c] sm:$0xf]
        %v754 = vunpack.c.l.b16 %v690
        %v755 = vunpack.c.l.b16 %v691
        %v756 = vunpack.c.l.b16 %v692
        %v757 = vunpack.c.l.b16 %v693
        %v758 = vunpack.c.l.b16 %v694
        %v759 = vunpack.c.l.b16 %v695
        %v760 = vunpack.c.l.b16 %v696
        %v761 = vunpack.c.l.b16 %v697
        %v762 = vunpack.c.l.b16 %v698
        %v763 = vunpack.c.l.b16 %v699
        %v764 = vunpack.c.l.b16 %v700
        %v765 = vunpack.c.l.b16 %v701
        %v766 = vunpack.c.l.b16 %v702
        %v767 = vunpack.c.l.b16 %v703
        %v768 = vunpack.c.l.b16 %v704
        %v769 = vunpack.c.l.b16 %v705
        %v770 = vunpack.c.l.b16 %v706
        %v771 = vunpack.c.l.b16 %v707
        %v772 = vunpack.c.l.b16 %v708
        %v773 = vunpack.c.l.b16 %v709
        %v774 = vunpack.c.l.b16 %v710
        %v775 = vunpack.c.l.b16 %v711
        %v776 = vunpack.c.l.b16 %v712
        %v777 = vunpack.c.l.b16 %v713
        %v778 = vunpack.c.l.b16 %v714
        %v779 = vunpack.c.l.b16 %v715
        %v780 = vunpack.c.l.b16 %v716
        %v781 = vunpack.c.l.b16 %v717
        %v782 = vunpack.c.l.b16 %v718
        %v783 = vunpack.c.l.b16 %v719
        %v784 = vunpack.c.l.b16 %v720
        %v785 = vunpack.c.l.b16 %v721
        %v786 = vpack.c.b16 %v755, %v754
        %v787 = vpack.c.b16 %v757, %v756
        %v788 = vpack.c.b16 %v759, %v758
        %v789 = vpack.c.b16 %v761, %v760
        %v790 = vpack.c.b16 %v763, %v762
        %v791 = vpack.c.b16 %v765, %v764
        %v792 = vpack.c.b16 %v767, %v766
        %v793 = vpack.c.b16 %v769, %v768
        %v794 = vpack.c.b16 %v771, %v770
        %v795 = vpack.c.b16 %v773, %v772
        %v796 = vpack.c.b16 %v775, %v774
        %v797 = vpack.c.b16 %v777, %v776
        %v798 = vpack.c.b16 %v779, %v778
        %v799 = vpack.c.b16 %v781, %v780
        %v800 = vpack.c.b16 %v783, %v782
        %v801 = vpack.c.b16 %v785, %v784
        %818 = vmatprep.subr.bf16.mxu0 0
        %819 = vmatpush1.bf16.msra.mxu0 %v793
        %820 = vmatprep.subr.bf16.mxu0 0
        %821 = vmatpush1.bf16.msra.mxu0 %v792
        %822 = vmatprep.subr.bf16.mxu0 0
        %823 = vmatpush1.bf16.msra.mxu0 %v791
        %824 = vmatprep.subr.bf16.mxu0 0
        %825 = vmatpush1.bf16.msra.mxu0 %v790
        %826 = vmatprep.subr.bf16.mxu0 0
        %827 = vmatpush1.bf16.msra.mxu0 %v789
        %828 = vmatprep.subr.bf16.mxu0 0
        %829 = vmatpush1.bf16.msra.mxu0 %v788
        %830 = vmatprep.subr.bf16.mxu0 0
        %831 = vmatpush1.bf16.msra.mxu0 %v787
        %832 = vmatprep.subr.bf16.mxu0 0
        %833 = vmatpush1.bf16.msra.mxu0 %v786
        %834 = vmatprep.subr.bf16.mxu0 0
        %835 = vmatpush2.bf16.msra.mxu0 %v801
        %836 = vmatprep.subr.bf16.mxu0 0
        %837 = vmatpush2.bf16.msra.mxu0 %v800
        %838 = vmatprep.subr.bf16.mxu0 0
        %839 = vmatpush2.bf16.msra.mxu0 %v799
        %840 = vmatprep.subr.bf16.mxu0 0
        %841 = vmatpush2.bf16.msra.mxu0 %v798
        %842 = vmatprep.subr.bf16.mxu0 0
        %843 = vmatpush2.bf16.msra.mxu0 %v797
        %844 = vmatprep.subr.bf16.mxu0 0
        %845 = vmatpush2.bf16.msra.mxu0 %v796
        %846 = vmatprep.subr.bf16.mxu0 0
        %847 = vmatpush2.bf16.msra.mxu0 %v795
        %848 = vmatprep.subr.bf16.mxu0 0
        %849 = vmatpush2.bf16.msra.mxu0 %v794
        %850 = vmatprep.mubr.bf16.mxu0 %v689
        %851 = vmatmul.mubr.bf16.gmra.mxu0 %v688
        %v852 = vpop.f32.mrf.mxu0
        %v853 = vadd.f32 0.0, %v852
        %v854 = vpop.f32.mrf.mxu0
        %v855 = vpop.f32.mrf.mxu0
        %v856 = vpop.f32.mrf.mxu0
        %857 = vdwg.mxu0
        %v858 = vmax.f32 %v853, 0.0
        %v859 = vld [vmem:[%s337] sm:$0xf]
        %v860 = vunpack.c.l.bf16 %v859
        %v861 = vmul.f32 %v858, %v860
        %vm862 = vcmask 261120
        %863 = vst.msk [vmem:[%s324] sm:$0xff] %vm862, %v861
        %s864 = sand.u32 %s213, 1
        %s865 = scalar_lea.sflag [#allocation3], %s864
        %s866 = sand.u32 %s213, 1
        %s867 = smul.addr %s866, 8
        %s868 = scalar_lea.vmem [#allocation2], %s867
        // Predicated region
        $region53: #{mean_aggregator_attention.1} parent=51 // pred_check
          %p869 = pneg %p223
        $region54: #{mean_aggregator_attention.1} parent=51 // pred_check_branch
          %871 = sbr.rel (%p869) target = $region56
        $region55: #{mean_aggregator_attention.1} parent=51 // pred_region
          %s873 = ssub.s32 128, 128
          %874 = vsyncadd %s865, %s873
          %s875 = smul.addr %s22, 128
          %s876 = scalar_lea.hbm %s8, %s875
          %s878 = sshll.u32 %s868, 4
          %s879 = int_to_ptr.vmem [resolvable:$true] %s878
          %881 = dma.vmem_to_hbm [thread:$0]  %s879, 128, %s876, %s865
        $region56: #{mean_aggregator_attention.1} parent=51 // pred_fallthru
          _
      $region52: #{mean_aggregator_attention.1} parent=5 // pred_fallthru
        _
      %p882 = scmp.le.s32.totalorder 2, %s17
      // Predicated region
      $region57: #{mean_aggregator_attention.1} parent=5 // pred_check
        %p883 = pneg %p882
      $region58: #{mean_aggregator_attention.1} parent=5 // pred_check_branch
        %885 = sbr.rel (%p883) target = $region60
      $region59: #{mean_aggregator_attention.1} parent=5 // pred_region
        %s886 = ssub.s32 %s17, 2
        // Predicated region
        $region61: #{mean_aggregator_attention.1} parent=59 // pred_check
          %p887 = pneg %p229
        $region62: #{mean_aggregator_attention.1} parent=59 // pred_check_branch
          %889 = sbr.rel (%p887) target = $region64
        $region63: #{mean_aggregator_attention.1} parent=59 // pred_region
          %s890 = sand.u32 %s214, 1
          %s891 = scalar_lea.sflag [#allocation3], %s890
          %s892 = sand.u32 %s214, 1
          %s893 = smul.addr %s892, 8
          %s894 = scalar_lea.vmem [#allocation2], %s893
          %895 = dma.done %s891, 128
        $region64: #{mean_aggregator_attention.1} parent=59 // pred_fallthru
          _
      $region60: #{mean_aggregator_attention.1} parent=5 // pred_fallthru
        _
    $region6: #{mean_aggregator_attention.1} parent=1 // loop_footer
      %s21 = sadd.s32 1, %s17
    $region7: #{mean_aggregator_attention.1} parent=1 // loop_footer_branch
      %16 = sbr.rel target = $region3
    $region8: #{mean_aggregator_attention.1} parent=1 // loop_exit
      _
    %896 = vsyncpa [#allocation3], 1
    %s897 = scalar_lea.sflag [#allocation3], 1
    %898 = vsyncpa %s897, 1

</llo_original>
